<compile_context>
chip_gen: v7x
topology: tpu7x:2x2x1
jax: 0.10.0
libtpu: 0.0.40
codegen_flags: <defaults>
</compile_context>

<pallas_src>
import math
import numpy as np
import jax
import jax.numpy as jnp
from jax.experimental import pallas as pl
from jax.experimental.pallas import tpu as pltpu

_LANES = 128


# ----------------------------- DCT weight setup ----------------------------- #
def get_1d_dct(i, freq, L):
    result = math.cos(math.pi * freq * (i + 0.5) / L) / math.sqrt(L)
    if freq == 0:
        return result
    return result * math.sqrt(2)


def get_dct_weights(width, height, channel,
                    fidx_u=(0, 0, 6, 0, 0, 1, 1, 4, 5, 1, 3, 0, 0, 0, 2, 3),
                    fidx_v=(0, 1, 0, 5, 2, 0, 2, 0, 0, 6, 0, 4, 6, 3, 2, 5)):
    scale_ratio = width // 4
    fidx_u = [u * scale_ratio for u in fidx_u]
    fidx_v = [v * scale_ratio for v in fidx_v]
    w = np.zeros((channel, width, height), dtype=np.float32)
    c_part = channel // len(fidx_u)
    for i, (u_x, v_y) in enumerate(zip(fidx_u, fidx_v)):
        for t_x in range(width):
            for t_y in range(height):
                w[i * c_part:(i + 1) * c_part, t_x, t_y] = (
                    get_1d_dct(t_x, u_x, width) * get_1d_dct(t_y, v_y, height))
    return w  # (channel, width, height); module only uses width == height


# --------------------------------- kernel ----------------------------------- #
def _make_fcase_kernel(hw, s_tile, needs_mask, w_resident):
    """Kernel closure with static hw / s_tile / masking / w-residency baked in."""
    n_chunks = s_tile // _LANES

    def kernel(x_ref, w_ref, fc1_ref, fc2_ref, o_ref, acc_ref):
        # x_ref:   (b_tile, C, s_tile)  activation block (bf16 or f32)
        # w_ref:   (C, hw_pad) if w_resident else (C, s_tile)  fused pool*DCT weight
        # fc1_ref: (C, hid)             first FC weight (transposed nn.Linear)
        # fc2_ref: (hid, C)             second FC weight (transposed nn.Linear)
        # o_ref:   (b_tile, C)          sigmoid channel gates (written on last step)
        # acc_ref: (b_tile, C, 128)     lane-partial f32 accumulator (VMEM scratch)
        s_idx = pl.program_id(1)

        @pl.when(s_idx == 0)
        def _init():
            acc_ref[...] = jnp.zeros_like(acc_ref)

        if needs_mask:
            lane = jax.lax.broadcasted_iota(jnp.int32, (1, 1, _LANES), 2)

        base = s_idx * s_tile
        # Lane-partial weighted accumulation: per 128-lane chunk a VPU
        # multiply-add straight into VMEM (bounded live range); the single
        # cross-lane XLU reduce happens once in the finalize step.
        for k in range(n_chunks):                       # static, small unroll
            lo = k * _LANES
            xk = x_ref[:, :, lo:lo + _LANES].astype(jnp.float32)     # (bt, C, 128)
            if w_resident:
                start = pl.multiple_of(base + lo, _LANES)
                wk = w_ref[:, pl.ds(start, _LANES)].astype(jnp.float32)   # (C, 128)
            else:
                wk = w_ref[:, lo:lo + _LANES].astype(jnp.float32)         # (C, 128)
            prod = xk * wk[None, :, :]
            if needs_mask:
                # Kill the ragged tail (cols >= hw): both the x and w OOB block
                # regions are unspecified, so mask the product (select, not *0).
                col = base + lo + lane
                prod = jnp.where(col < hw, prod, 0.0)
            acc_ref[...] += prod

        @pl.when(s_idx == pl.num_programs(1) - 1)
        def _finalize():
            y = jnp.sum(acc_ref[...], axis=-1)                   # (bt, C) one XLU reduce
            h = jnp.dot(y, fc1_ref[...], preferred_element_type=jnp.float32)
            h = jnp.maximum(h, 0.0)
            z = jnp.dot(h, fc2_ref[...], preferred_element_type=jnp.float32)
            o_ref[...] = jax.nn.sigmoid(z).astype(o_ref.dtype)

    return kernel


# ------------------------------ param prep (once) ---------------------------- #
def _round_up(x, m):
    return ((x + m - 1) // m) * m


def prepare_fcase_params(dct_w, fc1_w, fc2_w, H, W, height, width):
    """One-time host prep: fuse adaptive_avg_pool + DCT weights into a per-pixel
    weight (f32, kept f32 for accuracy) and transpose the nn.Linear weights."""
    c = dct_w.shape[0]
    assert H % height == 0 and W % width == 0, "pool sizes must divide input"
    kh, kw = H // height, W // width
    w = np.asarray(dct_w, dtype=np.float64)                       # (c, ph, pw)
    w = np.repeat(np.repeat(w, kh, axis=1), kw, axis=2) / float(kh * kw)
    w = w.reshape(c, H * W)
    return {
        "w": jnp.asarray(w, jnp.float32),                         # (c, H*W)
        "fc1": jnp.asarray(np.asarray(fc1_w).T, jnp.float32),     # (c, hid)
        "fc2": jnp.asarray(np.asarray(fc2_w).T, jnp.float32),     # (hid, c)
    }


# ------------------------------ tiling heuristics ----------------------------- #
def _vmem_capacity_bytes():
    try:
        return int(pltpu.get_tpu_info().vmem_capacity_bytes)
    except Exception:
        return 64 * 1024 * 1024        # conservative (v7x-sized) fallback


def _choose_tiling(b, c, hw, x_itemsize, hid, *, vmem_cap, w_resident_req=None):
    hw128 = _round_up(hw, _LANES)
    block_budget = vmem_cap // 2                 # ~64 MiB v5e/v6e, ~32 MiB v7x
    w_bytes = c * hw128 * 4
    if w_resident_req is None:
        w_resident = w_bytes <= min(vmem_cap // 8, 16 * 1024 * 1024)
    else:
        w_resident = bool(w_resident_req)

    # b_tile: multiple of 8 (<=32), leaving >=2 batch grid steps when b >= 16
    # (v7x megacore). b < 8 keeps the whole batch as one full-dim block.
    if b < 8:
        b_cands = [b]
    else:
        top = min(32, max(8, ((b // 2) // 8) * 8))
        b_cands = list(range(top, 7, -8))

    min_s = min(hw128, 4 * _LANES)               # prefer >= 512-lane DMA runs
    chosen = (b_cands[-1], _LANES)
    for bt in b_cands:                           # largest first, shrink if needed
        fixed = (bt * c * _LANES * 4             # f32 lane-partial accumulator
                 + 2 * (c * hid + hid * c) * 4   # fc1/fc2 blocks (2x buffered)
                 + 2 * bt * c * 4)               # output block (2x buffered)
        if w_resident:
            fixed += 2 * w_bytes                 # resident fused weight
            per_lane = 2 * bt * c * x_itemsize   # double-buffered x block
        else:
            per_lane = 2 * (bt * c * x_itemsize + c * 4)
        avail = max(0, block_budget - fixed)
        lanes = (avail // per_lane // _LANES) * _LANES
        chosen = (bt, max(lanes, _LANES))
        if lanes >= min_s:
            break
    b_tile, max_lanes = chosen

    s_cap = max(_LANES, min(max_lanes, hw128, 16 * _LANES))   # cap unroll at 2048 lanes
    n_s = pl.cdiv(hw128, s_cap)
    s_tile = _round_up(pl.cdiv(hw128, n_s), _LANES)
    return b_tile, s_tile, w_resident


# -------------------------------- forward ------------------------------------ #
def fca_se_forward(x, params, *, s_tile=None, w_resident=None,
                   vmem_capacity_bytes=None):
    """x: (b, c, H, W) bf16 or f32. params from prepare_fcase_params."""
    b, c, H, W = x.shape
    hw = H * W
    w, fc1, fc2 = params["w"], params["fc1"], params["fc2"]
    hid = fc1.shape[1]
    assert w.shape == (c, hw)

    itemsize = jnp.dtype(x.dtype).itemsize
    vmem_cap = int(vmem_capacity_bytes or _vmem_capacity_bytes())
    vmem_limit = int(min(vmem_cap * 3 // 4, 96 * 1024 * 1024))

    b_tile, auto_s_tile, w_res = _choose_tiling(
        b, c, hw, itemsize, hid, vmem_cap=vmem_cap, w_resident_req=w_resident)
    if s_tile is None:
        s_tile = auto_s_tile
    else:
        assert s_tile % _LANES == 0 and s_tile > 0
    n_s = pl.cdiv(hw, s_tile)
    n_b = pl.cdiv(b, b_tile)
    hw_pad = n_s * s_tile
    needs_mask = (hw_pad != hw)       # ragged tail handled in-kernel, never padded

    x_flat = x.reshape(b, c, hw)      # no host-side padding / no extra HBM copy

    if w_res:
        w_spec = pl.BlockSpec((c, hw_pad), lambda i, s: (0, 0))      # fully resident
    else:
        w_spec = pl.BlockSpec((c, s_tile), lambda i, s: (0, s))      # streamed blocks

    kernel = _make_fcase_kernel(hw, s_tile, needs_mask, w_res)

    w_reads = 1 if w_res else n_b
    cost = pl.CostEstimate(
        flops=2 * b * c * hw + 4 * b * c * hid,
        transcendentals=b * c,
        bytes_accessed=int(b * c * hw * itemsize + w_reads * c * hw * 4
                           + (fc1.size + fc2.size) * 4 + b * c * 4),
    )

    gates = pl.pallas_call(
        kernel,
        out_shape=jax.ShapeDtypeStruct((b, c), jnp.float32),
        grid_spec=pltpu.PrefetchScalarGridSpec(
            num_scalar_prefetch=0,
            grid=(n_b, n_s),
            in_specs=[
                pl.BlockSpec((b_tile, c, s_tile), lambda i, s: (i, 0, s)),
                w_spec,
                pl.BlockSpec((c, hid), lambda i, s: (0, 0)),   # resident
                pl.BlockSpec((hid, c), lambda i, s: (0, 0)),   # resident
            ],
            out_specs=pl.BlockSpec((b_tile, c), lambda i, s: (i, 0)),
            scratch_shapes=[pltpu.VMEM((b_tile, c, _LANES), jnp.float32)],
        ),
        compiler_params=pltpu.CompilerParams(
            dimension_semantics=("parallel", "arbitrary"),
            vmem_limit_bytes=vmem_limit,
        ),
        cost_estimate=cost,
    )(x_flat, w, fc1, fc2)

    return gates.reshape(b, c, 1, 1)


# ------------------------------ reference (JAX) ------------------------------ #
def fca_se_reference(x, dct_w, fc1_w, fc2_w, height, width):
    b, c, H, W = x.shape
    kh, kw = H // height, W // width
    xf = x.astype(jnp.float32)
    pooled = xf.reshape(b, c, height, kh, width, kw).mean(axis=(3, 5))
    y = jnp.sum(pooled * jnp.asarray(dct_w, jnp.float32)[None], axis=(2, 3))
    hi = jax.lax.Precision.HIGHEST
    y = jnp.maximum(jnp.dot(y, jnp.asarray(np.asarray(fc1_w).T, jnp.float32),
                            precision=hi), 0.0)
    y = jax.nn.sigmoid(jnp.dot(y, jnp.asarray(np.asarray(fc2_w).T, jnp.float32),
                               precision=hi))
    return y.reshape(b, c, 1, 1)


if __name__ == "__main__":
    # FcaSE(channel=16, reduction=4, width=8, height=8)
    channel, reduction = 16, 4
    pool = 8
    hid = channel // reduction

    key = jax.random.PRNGKey(0)
    kx, k1, k2, kx2 = jax.random.split(key, 4)

    bound1 = 1.0 / math.sqrt(channel)
    bound2 = 1.0 / math.sqrt(hid)
    fc1_w = jax.random.uniform(k1, (hid, channel), jnp.float32, -bound1, bound1)
    fc2_w = jax.random.uniform(k2, (channel, hid), jnp.float32, -bound2, bound2)
    dct_w = get_dct_weights(pool, pool, channel)                  # (c, 8, 8)

    # ---- case 1: 16x16 input (hw=256), f32, auto tiling (resident w, 1 step)
    b, H, W = 2, 16, 16
    x1 = jax.random.normal(kx, (b, channel, H, W), dtype=jnp.float32)
    params1 = prepare_fcase_params(dct_w, fc1_w, fc2_w, H, W, pool, pool)
    ref1 = jax.block_until_ready(
        fca_se_reference(x1, dct_w, fc1_w, fc2_w, pool, pool))
    out1 = jax.block_until_ready(fca_se_forward(x1, params1))
    np.testing.assert_allclose(np.asarray(out1), np.asarray(ref1),
                               rtol=1e-3, atol=1e-3)

    # ---- case 2: bf16 activations, forced s_tile=128 -> 2 spatial grid steps
    #      (exercises init / accumulate / finalize); correctness-only config.
    out2 = jax.block_until_ready(
        fca_se_forward(x1.astype(jnp.bfloat16), params1, s_tile=128))
    np.testing.assert_allclose(np.asarray(out2), np.asarray(ref1),
                               rtol=2e-2, atol=2e-2)

    # ---- case 3: 24x24 input (hw=576, not a multiple of 128) -> in-kernel tail
    #      masking, forced streamed (non-resident) w path, 3 spatial steps.
    H3 = W3 = 24
    x3 = jax.random.normal(kx2, (b, channel, H3, W3), dtype=jnp.float32)
    params3 = prepare_fcase_params(dct_w, fc1_w, fc2_w, H3, W3, pool, pool)
    ref3 = jax.block_until_ready(
        fca_se_reference(x3, dct_w, fc1_w, fc2_w, pool, pool))
    out3 = jax.block_until_ready(
        fca_se_forward(x3, params3, s_tile=256, w_resident=False))
    np.testing.assert_allclose(np.asarray(out3), np.asarray(ref3),
                               rtol=1e-3, atol=1e-3)

    # ---- case 4: same ragged input, auto tiling (resident w, single partial block)
    out4 = jax.block_until_ready(fca_se_forward(x3, params3))
    np.testing.assert_allclose(np.asarray(out4), np.asarray(ref3),
                               rtol=1e-3, atol=1e-3)

    assert out1.shape == (b, channel, 1, 1)
    assert out4.shape == (b, channel, 1, 1)
    print("KERNEL_OK")
</pallas_src>

<mosaic_0001>
module attributes {stable_mosaic.version = 11 : i64} {
  func.func @kernel(%arg0: i32, %arg1: i32, %arg2: memref<2x16x256xf32, #tpu.memory_space<vmem>>, %arg3: memref<16x256xf32, #tpu.memory_space<vmem>>, %arg4: memref<16x4xf32, #tpu.memory_space<vmem>>, %arg5: memref<4x16xf32, #tpu.memory_space<vmem>>, %arg6: memref<2x16xf32, #tpu.memory_space<vmem>>, %arg7: memref<2x16x128xf32, #tpu.memory_space<vmem>>) attributes {dimension_semantics = [#tpu.dimension_semantics<parallel>, #tpu.dimension_semantics<arbitrary>], iteration_bounds = array<i64: 1, 1>, scalar_prefetch = 0 : i64, scratch_operands = 1 : i64, tpu.core_type = #tpu.core_type<tc>, window_params = [{transform_indices = @transform_0, window_bounds = array<i64: 2, 16, 256>}, {pipeline_mode = #tpu.pipeline_mode<synchronous>, transform_indices = @transform_1, window_bounds = array<i64: 16, 256>}, {pipeline_mode = #tpu.pipeline_mode<synchronous>, transform_indices = @transform_2, window_bounds = array<i64: 16, 4>}, {pipeline_mode = #tpu.pipeline_mode<synchronous>, transform_indices = @transform_3, window_bounds = array<i64: 4, 16>}, {transform_indices = @transform_4, window_bounds = array<i64: 2, 16>}]} {
    %c0_i32 = arith.constant 0 : i32
    %0 = arith.cmpi eq, %arg1, %c0_i32 : i32
    %1 = arith.extui %0 : i1 to i32
    %c0_i32_0 = arith.constant 0 : i32
    %2 = arith.cmpi ne, %1, %c0_i32_0 : i32
    scf.if %2 {
      %cst = arith.constant 0.000000e+00 : f32
      %29 = vector.broadcast %cst : f32 to vector<2x16x128xf32>
      %c0_22 = arith.constant 0 : index
      %c0_23 = arith.constant 0 : index
      %c0_24 = arith.constant 0 : index
      %30 = vector.load %arg7[%c0_22, %c0_23, %c0_24] : memref<2x16x128xf32, #tpu.memory_space<vmem>>, vector<2x16x128xf32>
      tpu.vector_store %arg7[%c0_22, %c0_23, %c0_24], %29 {strides = array<i32>} : memref<2x16x128xf32, #tpu.memory_space<vmem>>, vector<2x16x128xf32>,
    } else {
    }
    %c256_i32 = arith.constant 256 : i32
    %3 = arith.muli %arg1, %c256_i32 : i32
    %c0 = arith.constant 0 : index
    %c0_1 = arith.constant 0 : index
    %c0_2 = arith.constant 0 : index
    %4 = vector.load %arg2[%c0, %c0_1, %c0_2] : memref<2x16x256xf32, #tpu.memory_space<vmem>>, vector<2x16x128xf32>
    %c0_i32_3 = arith.constant 0 : i32
    %5 = arith.addi %3, %c0_i32_3 : i32
    %6 = tpu.assume_multiple %5, 128 : i32
    %c0_4 = arith.constant 0 : index
    %7 = arith.index_cast %6 : i32 to index
    %8 = vector.load %arg3[%c0_4, %7] : memref<16x256xf32, #tpu.memory_space<vmem>>, vector<16x128xf32>
    %9 = vector.shape_cast %8 : vector<16x128xf32> to vector<1x16x128xf32>
    %10 = vector.broadcast %9 : vector<1x16x128xf32> to vector<2x16x128xf32>
    %11 = arith.mulf %4, %10 : vector<2x16x128xf32>
    %c0_5 = arith.constant 0 : index
    %c0_6 = arith.constant 0 : index
    %c0_7 = arith.constant 0 : index
    %12 = vector.load %arg7[%c0_5, %c0_6, %c0_7] : memref<2x16x128xf32, #tpu.memory_space<vmem>>, vector<2x16x128xf32>
    %13 = arith.addf %12, %11 : vector<2x16x128xf32>
    %c0_8 = arith.constant 0 : index
    %c0_9 = arith.constant 0 : index
    %c0_10 = arith.constant 0 : index
    %14 = vector.load %arg7[%c0_8, %c0_9, %c0_10] : memref<2x16x128xf32, #tpu.memory_space<vmem>>, vector<2x16x128xf32>
    tpu.vector_store %arg7[%c0_8, %c0_9, %c0_10], %13 {strides = array<i32>} : memref<2x16x128xf32, #tpu.memory_space<vmem>>, vector<2x16x128xf32>,
    %c0_11 = arith.constant 0 : index
    %c0_12 = arith.constant 0 : index
    %c128 = arith.constant 128 : index
    %15 = vector.load %arg2[%c0_11, %c0_12, %c128] : memref<2x16x256xf32, #tpu.memory_space<vmem>>, vector<2x16x128xf32>
    %c128_i32 = arith.constant 128 : i32
    %16 = arith.addi %3, %c128_i32 : i32
    %17 = tpu.assume_multiple %16, 128 : i32
    %c0_13 = arith.constant 0 : index
    %18 = arith.index_cast %17 : i32 to index
    %19 = vector.load %arg3[%c0_13, %18] : memref<16x256xf32, #tpu.memory_space<vmem>>, vector<16x128xf32>
    %20 = vector.shape_cast %19 : vector<16x128xf32> to vector<1x16x128xf32>
    %21 = vector.broadcast %20 : vector<1x16x128xf32> to vector<2x16x128xf32>
    %22 = arith.mulf %15, %21 : vector<2x16x128xf32>
    %c0_14 = arith.constant 0 : index
    %c0_15 = arith.constant 0 : index
    %c0_16 = arith.constant 0 : index
    %23 = vector.load %arg7[%c0_14, %c0_15, %c0_16] : memref<2x16x128xf32, #tpu.memory_space<vmem>>, vector<2x16x128xf32>
    %24 = arith.addf %23, %22 : vector<2x16x128xf32>
    %c0_17 = arith.constant 0 : index
    %c0_18 = arith.constant 0 : index
    %c0_19 = arith.constant 0 : index
    %25 = vector.load %arg7[%c0_17, %c0_18, %c0_19] : memref<2x16x128xf32, #tpu.memory_space<vmem>>, vector<2x16x128xf32>
    tpu.vector_store %arg7[%c0_17, %c0_18, %c0_19], %24 {strides = array<i32>} : memref<2x16x128xf32, #tpu.memory_space<vmem>>, vector<2x16x128xf32>,
    %c0_i32_20 = arith.constant 0 : i32
    %26 = arith.cmpi eq, %arg1, %c0_i32_20 : i32
    %27 = arith.extui %26 : i1 to i32
    %c0_i32_21 = arith.constant 0 : i32
    %28 = arith.cmpi ne, %27, %c0_i32_21 : i32
    scf.if %28 {
      %c0_22 = arith.constant 0 : index
      %c0_23 = arith.constant 0 : index
      %c0_24 = arith.constant 0 : index
      %29 = vector.load %arg7[%c0_22, %c0_23, %c0_24] : memref<2x16x128xf32, #tpu.memory_space<vmem>>, vector<2x16x128xf32>
      %cst = arith.constant dense<0.000000e+00> : vector<2x16xf32>
      %30 = vector.multi_reduction <add>, %29, %cst [2] : vector<2x16x128xf32> to vector<2x16xf32>
      %c0_25 = arith.constant 0 : index
      %c0_26 = arith.constant 0 : index
      %31 = vector.load %arg4[%c0_25, %c0_26] : memref<16x4xf32, #tpu.memory_space<vmem>>, vector<16x4xf32>
      %cst_27 = arith.constant dense<0.000000e+00> : vector<2x4xf32>
      %32 = tpu.matmul %30, %31, %cst_27 {dimension_numbers = #tpu.dot_dimension_numbers<[1], [0], [0], [1], [0, 0, 1, 1], [], []>} : vector<2x16xf32>, vector<16x4xf32>, vector<2x4xf32> -> vector<2x4xf32>
      %cst_28 = arith.constant 0.000000e+00 : f32
      %33 = vector.broadcast %cst_28 : f32 to vector<2x4xf32>
      %34 = arith.maximumf %32, %33 : vector<2x4xf32>
      %c0_29 = arith.constant 0 : index
      %c0_30 = arith.constant 0 : index
      %35 = vector.load %arg5[%c0_29, %c0_30] : memref<4x16xf32, #tpu.memory_space<vmem>>, vector<4x16xf32>
      %cst_31 = arith.constant dense<0.000000e+00> : vector<2x16xf32>
      %36 = tpu.matmul %34, %35, %cst_31 {dimension_numbers = #tpu.dot_dimension_numbers<[1], [0], [0], [1], [0, 0, 1, 1], [], []>} : vector<2x4xf32>, vector<4x16xf32>, vector<2x16xf32> -> vector<2x16xf32>
      %37 = arith.negf %36 : vector<2x16xf32>
      %38 = math.exp %37 : vector<2x16xf32>
      %cst_32 = arith.constant 1.000000e+00 : f32
      %39 = vector.broadcast %cst_32 : f32 to vector<2x16xf32>
      %40 = arith.addf %39, %38 : vector<2x16xf32>
      %41 = arith.divf %39, %40 : vector<2x16xf32>
      %c0_33 = arith.constant 0 : index
      %c0_34 = arith.constant 0 : index
      %42 = vector.load %arg6[%c0_33, %c0_34] : memref<2x16xf32, #tpu.memory_space<vmem>>, vector<2x16xf32>
      tpu.vector_store %arg6[%c0_33, %c0_34], %41 {strides = array<i32>} : memref<2x16xf32, #tpu.memory_space<vmem>>, vector<2x16xf32>,
    } else {
    }
    return
  }
  func.func @transform_0(%arg0: i32, %arg1: i32) -> (i32, i32, i32) {
    %c0_i32 = arith.constant 0 : i32
    %c0_i32_0 = arith.constant 0 : i32
    return %arg0, %c0_i32, %arg1 : i32, i32, i32
  }
  func.func @transform_1(%arg0: i32, %arg1: i32) -> (i32, i32) {
    %c0_i32 = arith.constant 0 : i32
    %c0_i32_0 = arith.constant 0 : i32
    %c0_i32_1 = arith.constant 0 : i32
    return %c0_i32, %c0_i32_0 : i32, i32
  }
  func.func @transform_2(%arg0: i32, %arg1: i32) -> (i32, i32) {
    %c0_i32 = arith.constant 0 : i32
    %c0_i32_0 = arith.constant 0 : i32
    %c0_i32_1 = arith.constant 0 : i32
    return %c0_i32, %c0_i32_0 : i32, i32
  }
  func.func @transform_3(%arg0: i32, %arg1: i32) -> (i32, i32) {
    %c0_i32 = arith.constant 0 : i32
    %c0_i32_0 = arith.constant 0 : i32
    %c0_i32_1 = arith.constant 0 : i32
    return %c0_i32, %c0_i32_0 : i32, i32
  }
  func.func @transform_4(%arg0: i32, %arg1: i32) -> (i32, i32) {
    %c0_i32 = arith.constant 0 : i32
    %c0_i32_0 = arith.constant 0 : i32
    return %arg0, %c0_i32 : i32, i32
  }
}

</mosaic_0001>

<llo_original>
// kernel: tpu_custom_call.1
$region0: #{tpu_custom_call.1}
  #allocation0 [shape = 'u32[]', space=smem, size = 0x4, offset = 0x4, fixed_abs, tag = 'smem constant byte address 0x4 - core index']
  #allocation1 [shape = 'u32[144,128]{1,0:T(1,128)}', space=vmem, size = 0x12000, scoped, tag = 'internal scratch']
  #allocation2 [shape = 'f32[2,16,128]{2,1,0:T(8,128)}', space=vmem, size = 0x4000, scoped, tag = 'scratch operand']
  %s0 = inlined_call_operand.hbm [shape: f32[2,16,256], index: 0, kind: input, shape index: {}]
  %s1 = inlined_call_operand.hbm [shape: f32[16,256], index: 1, kind: input, shape index: {}]
  %s2 = inlined_call_operand.vmem [shape: f32[16,4], index: 2, kind: input, shape index: {}]
  %s3 = inlined_call_operand.vmem [shape: f32[4,16], index: 3, kind: input, shape index: {}]
  %s4 = inlined_call_operand.hbm [shape: f32[2,16], index: 4, kind: output, shape index: {}]
  %s5 = sld [smem:[#allocation0]]
  $region42: #{tpu_custom_call.1} parent=0
    _
  %s7 = ssub.s32 1, %s5
  %s8 = scalar_select 0, %s7, %s5
  $region1: #{tpu_custom_call.1} parent=0
    #allocation3 [shape = 'u8[32768]{0}', space=vmem, size = 0x8000, scoped, tag = 'input window, operand 0, single buffered']
    #allocation4 [shape = 's32[1]{0}', space=sflag, size = 0x4, scoped, tag = 'scoped memory for tpu_custom_call.1']
    #allocation5 [shape = 's32[1]{0}', space=sflag, size = 0x4, scoped, tag = 'scoped memory for tpu_custom_call.1']
    #allocation6 [shape = 'u8[16384]{0}', space=vmem, size = 0x4000, scoped, tag = 'input window, operand 1, single buffered']
    #allocation7 [shape = 's32[1]{0}', space=sflag, size = 0x4, scoped, tag = 'scoped memory for tpu_custom_call.1']
    #allocation8 [shape = 'u8[1024]{0}', space=vmem, size = 0x400, scoped, tag = 'output window, operand 0, single buffered']
    %9 = vsyncpa [#allocation4], 0
    %10 = vsyncpa [#allocation7], 0
    %11 = vsyncpa [#allocation5], 0
    // Predicated region
    $region2: #{tpu_custom_call.1} parent=1 // pred_check
      _
    $region3: #{tpu_custom_call.1} parent=1 // pred_check_branch
      %13 = sbr.rel (0) target = $region5
    $region4: #{tpu_custom_call.1} parent=1 // pred_region
      %s15 = ssub.s32 1024, 1024
      %16 = vsyncadd [#allocation4], %s15
      %s17 = sshll.u32 [#allocation3], 4
      %s18 = int_to_ptr.vmem [resolvable:$true] %s17
      %23 = dma.hbm_to_vmem [thread:$0]  %s0, 1024, %s18, [#allocation4], 256, 256, 16
    $region5: #{tpu_custom_call.1} parent=1 // pred_fallthru
      _
    // Predicated region
    $region6: #{tpu_custom_call.1} parent=1 // pred_check
      _
    $region7: #{tpu_custom_call.1} parent=1 // pred_check_branch
      %25 = sbr.rel (0) target = $region9
    $region8: #{tpu_custom_call.1} parent=1 // pred_region
      %s27 = ssub.s32 512, 512
      %28 = vsyncadd [#allocation7], %s27
      %s29 = sshll.u32 [#allocation6], 4
      %s30 = int_to_ptr.vmem [resolvable:$true] %s29
      %35 = dma.hbm_to_vmem [thread:$0]  %s1, 512, %s30, [#allocation7], 256, 256, 16
    $region9: #{tpu_custom_call.1} parent=1 // pred_fallthru
      _
    // Predicated region
    $region10: #{tpu_custom_call.1} parent=1 // pred_check
      _
    $region11: #{tpu_custom_call.1} parent=1 // pred_check_branch
      %37 = sbr.rel (0) target = $region13
    $region12: #{tpu_custom_call.1} parent=1 // pred_region
      _
    $region13: #{tpu_custom_call.1} parent=1 // pred_fallthru
      _
    // Predicated region
    $region14: #{tpu_custom_call.1} parent=1 // pred_check
      _
    $region15: #{tpu_custom_call.1} parent=1 // pred_check_branch
      %39 = sbr.rel (0) target = $region17
    $region16: #{tpu_custom_call.1} parent=1 // pred_region
      _
    $region17: #{tpu_custom_call.1} parent=1 // pred_fallthru
      _
    // Predicated region
    $region18: #{tpu_custom_call.1} parent=1 // pred_check
      _
    $region19: #{tpu_custom_call.1} parent=1 // pred_check_branch
      %41 = sbr.rel (0) target = $region21
    $region20: #{tpu_custom_call.1} parent=1 // pred_region
      %42 = dma.done [#allocation4], 1024
    $region21: #{tpu_custom_call.1} parent=1 // pred_fallthru
      _
    // Predicated region
    $region22: #{tpu_custom_call.1} parent=1 // pred_check
      _
    $region23: #{tpu_custom_call.1} parent=1 // pred_check_branch
      %44 = sbr.rel (0) target = $region25
    $region24: #{tpu_custom_call.1} parent=1 // pred_region
      %45 = dma.done [#allocation7], 512
    $region25: #{tpu_custom_call.1} parent=1 // pred_fallthru
      _
    %p46 = scmp.eq.s32.totalorder 0, 0
    // Predicated region
    $region26: #{tpu_custom_call.1} parent=1 // pred_check
      %p47 = pneg %p46
    $region27: #{tpu_custom_call.1} parent=1 // pred_check_branch
      %49 = sbr.rel (%p47) target = $region29
    $region28: #{tpu_custom_call.1} parent=1 // pred_region
      %50 = vst [vmem:[#allocation2] sm:$0xff] 0.0
      %51 = vst [vmem:[#allocation2 + $0x8] sm:$0xff] 0.0
      %52 = vst [vmem:[#allocation2 + $0x10] sm:$0xff] 0.0
      %53 = vst [vmem:[#allocation2 + $0x18] sm:$0xff] 0.0
    $region29: #{tpu_custom_call.1} parent=1 // pred_fallthru
      _
    %s54 = smul.u32 0, 256
    %v55 = vld [vmem:[#allocation3] sm:$0xff]
    %v56 = vld [vmem:[#allocation3 + $0x10] sm:$0xff]
    %v57 = vld [vmem:[#allocation3 + $0x20] sm:$0xff]
    %v58 = vld [vmem:[#allocation3 + $0x30] sm:$0xff]
    %s59 = sshra.s32 %s54, 7
    %s60 = sand.u32 %s54, 127
    %s61 = smul.addr %s59, 8
    %s62 = scalar_lea.vmem [#allocation6], %s61
    %v63 = vld [vmem:[%s62] sm:$0xff]
    %v64 = vld [vmem:[%s62 + $0x10] sm:$0xff]
    %v65 = vmul.f32 %v55, %v63
    %v66 = vmul.f32 %v56, %v64
    %v67 = vmul.f32 %v57, %v63
    %v68 = vmul.f32 %v58, %v64
    %v69 = vld [vmem:[#allocation2] sm:$0xff]
    %v70 = vld [vmem:[#allocation2 + $0x8] sm:$0xff]
    %v71 = vld [vmem:[#allocation2 + $0x10] sm:$0xff]
    %v72 = vld [vmem:[#allocation2 + $0x18] sm:$0xff]
    %v73 = vadd.f32 %v69, %v65
    %v74 = vadd.f32 %v70, %v66
    %v75 = vadd.f32 %v71, %v67
    %v76 = vadd.f32 %v72, %v68
    %77 = vst [vmem:[#allocation2] sm:$0xff] %v73
    %78 = vst [vmem:[#allocation2 + $0x8] sm:$0xff] %v74
    %79 = vst [vmem:[#allocation2 + $0x10] sm:$0xff] %v75
    %80 = vst [vmem:[#allocation2 + $0x18] sm:$0xff] %v76
    %v81 = vld [vmem:[#allocation3 + $0x8] sm:$0xff]
    %v82 = vld [vmem:[#allocation3 + $0x18] sm:$0xff]
    %v83 = vld [vmem:[#allocation3 + $0x28] sm:$0xff]
    %v84 = vld [vmem:[#allocation3 + $0x38] sm:$0xff]
    %s85 = sadd.s32 %s54, 128
    %s86 = sshra.s32 %s85, 7
    %s87 = sand.u32 %s85, 127
    %s88 = smul.addr %s86, 8
    %s89 = scalar_lea.vmem [#allocation6], %s88
    %v90 = vld [vmem:[%s89] sm:$0xff]
    %v91 = vld [vmem:[%s89 + $0x10] sm:$0xff]
    %v92 = vmul.f32 %v81, %v90
    %v93 = vmul.f32 %v82, %v91
    %v94 = vmul.f32 %v83, %v90
    %v95 = vmul.f32 %v84, %v91
    %v96 = vld [vmem:[#allocation2] sm:$0xff]
    %v97 = vld [vmem:[#allocation2 + $0x8] sm:$0xff]
    %v98 = vld [vmem:[#allocation2 + $0x10] sm:$0xff]
    %v99 = vld [vmem:[#allocation2 + $0x18] sm:$0xff]
    %v100 = vadd.f32 %v96, %v92
    %v101 = vadd.f32 %v97, %v93
    %v102 = vadd.f32 %v98, %v94
    %v103 = vadd.f32 %v99, %v95
    %104 = vst [vmem:[#allocation2] sm:$0xff] %v100
    %105 = vst [vmem:[#allocation2 + $0x8] sm:$0xff] %v101
    %106 = vst [vmem:[#allocation2 + $0x10] sm:$0xff] %v102
    %107 = vst [vmem:[#allocation2 + $0x18] sm:$0xff] %v103
    // Predicated region
    $region30: #{tpu_custom_call.1} parent=1 // pred_check
      %p108 = pneg %p46
    $region31: #{tpu_custom_call.1} parent=1 // pred_check_branch
      %110 = sbr.rel (%p108) target = $region33
    $region32: #{tpu_custom_call.1} parent=1 // pred_region
      %v111 = vld [vmem:[#allocation2] sm:$0xff]
      %v112 = vld [vmem:[#allocation2 + $0x8] sm:$0xff]
      %v113 = vld [vmem:[#allocation2 + $0x10] sm:$0xff]
      %v114 = vld [vmem:[#allocation2 + $0x18] sm:$0xff]
      %115 = vadd.xlane.f32.xlu0 %v111
      %v116 = vpop.xlane.xlu0 %115
      %117 = vadd.xlane.f32.xlu0 %v112
      %v118 = vpop.xlane.xlu0 %117
      %119 = vadd.xlane.f32.xlu0 %v113
      %v120 = vpop.xlane.xlu0 %119
      %121 = vadd.xlane.f32.xlu0 %v114
      %v122 = vpop.xlane.xlu0 %121
      %v123 = vld [vmem:[%s2] sm:$0xff]
      %v124 = vld [vmem:[%s2 + $0x8] sm:$0xff]
      %v129 = vlaneseq
      %v130 = vand.u32 %v129, 127
      %v131 = vlaneseq
      %v132 = vshrl.u32 %v131, 7
      %v133 = vsub.s32 %v130, %v132
      %v134 = vrot.slane %v116, %v133
      %v135 = vadd.s32 %v130, 4294967288
      %v136 = vlaneseq
      %v137 = vshrl.u32 %v136, 7
      %v138 = vsub.s32 %v135, %v137
      %v139 = vrot.slane %v118, %v138
      %vm140 = vcmask 130112
      %v141 = vsel %vm140, %v139, %v134
      %v142 = vlaneseq
      %v143 = vshrl.u32 %v142, 7
      %v144 = vsub.s32 %v130, %v143
      %v145 = vrot.slane %v120, %v144
      %v146 = vlaneseq
      %v147 = vshrl.u32 %v146, 7
      %v148 = vsub.s32 %v135, %v147
      %v149 = vrot.slane %v122, %v148
      %v150 = vsel %vm140, %v149, %v145
      %vm151 = vcmask 1041409
      %v152 = vsel %vm151, %v150, %v141
      %vm153 = vcmask 130048
      %v154 = vsel %vm153, %v152, 0
      %156 = vmatprep.subr.mxu0 0.0
      %157 = vmatpush1.msra.mxu0 %v123
      %158 = vmatprep.subr.mxu0 0.0
      %159 = vmatpush1.msra.mxu0 %v124
      %160 = vmatprep.subr.mxu0 0.0
      %161 = vmatpush1.msra.mxu0 0.0
      %162 = vmatprep.subr.mxu0 0.0
      %163 = vmatpush1.msra.mxu0 0.0
      %164 = vmatprep.subr.mxu0 0.0
      %165 = vmatpush1.msra.mxu0 0.0
      %166 = vmatprep.subr.mxu0 0.0
      %167 = vmatpush1.msra.mxu0 0.0
      %168 = vmatprep.subr.mxu0 0.0
      %169 = vmatpush1.msra.mxu0 0.0
      %170 = vmatprep.subr.mxu0 0.0
      %171 = vmatpush1.msra.mxu0 0.0
      %172 = vmatprep.subr.mxu0 0.0
      %173 = vmatpush1.msra.mxu0 0.0
      %174 = vmatprep.subr.mxu0 0.0
      %175 = vmatpush1.msra.mxu0 0.0
      %176 = vmatprep.subr.mxu0 0.0
      %177 = vmatpush1.msra.mxu0 0.0
      %178 = vmatprep.subr.mxu0 0.0
      %179 = vmatpush1.msra.mxu0 0.0
      %180 = vmatprep.subr.mxu0 0.0
      %181 = vmatpush1.msra.mxu0 0.0
      %182 = vmatprep.subr.mxu0 0.0
      %183 = vmatpush1.msra.mxu0 0.0
      %184 = vmatprep.subr.mxu0 0.0
      %185 = vmatpush1.msra.mxu0 0.0
      %186 = vmatprep.subr.mxu0 0.0
      %187 = vmatpush1.msra.mxu0 0.0
      %188 = vmatprep.subr.mxu0 0.0
      %189 = vmatpush1.msra.mxu0 0.0
      %190 = vmatprep.subr.mxu0 0.0
      %191 = vmatpush1.msra.mxu0 0.0
      %192 = vmatprep.subr.mxu0 0.0
      %193 = vmatpush1.msra.mxu0 0.0
      %194 = vmatprep.subr.mxu0 0.0
      %195 = vmatpush1.msra.mxu0 0.0
      %196 = vmatprep.subr.mxu0 0.0
      %197 = vmatpush1.msra.mxu0 0.0
      %198 = vmatprep.subr.mxu0 0.0
      %199 = vmatpush1.msra.mxu0 0.0
      %200 = vmatprep.subr.mxu0 0.0
      %201 = vmatpush1.msra.mxu0 0.0
      %202 = vmatprep.subr.mxu0 0.0
      %203 = vmatpush1.msra.mxu0 0.0
      %204 = vmatprep.subr.mxu0 0.0
      %205 = vmatpush1.msra.mxu0 0.0
      %206 = vmatprep.subr.mxu0 0.0
      %207 = vmatpush1.msra.mxu0 0.0
      %208 = vmatprep.subr.mxu0 0.0
      %209 = vmatpush1.msra.mxu0 0.0
      %210 = vmatprep.subr.mxu0 0.0
      %211 = vmatpush1.msra.mxu0 0.0
      %212 = vmatprep.subr.mxu0 0.0
      %213 = vmatpush1.msra.mxu0 0.0
      %214 = vmatprep.subr.mxu0 0.0
      %215 = vmatpush1.msra.mxu0 0.0
      %216 = vmatprep.subr.mxu0 0.0
      %217 = vmatpush1.msra.mxu0 0.0
      %218 = vmatprep.subr.mxu0 0.0
      %219 = vmatpush1.msra.mxu0 0.0
      %220 = vmatprep.mubr.f32.mxu0 0.0
      %221 = vmatmul.mubr.f32.gmra.mrb[0].mxu0 %v154
      %v222 = vpop.f32.mrb[0].mxu0
      %v223 = vadd.f32 0.0, %v222
      %v224 = vpop.f32.mrb[0].mxu0
      %225 = vdwg.mxu0
      %v226 = vmax.f32 %v223, 0.0
      %v227 = vld [vmem:[%s3] sm:$0xf]
      %vm228 = vcmask 31744
      %v230 = vsel %vm228, %v226, 0
      %vm232 = vcmask 1043456
      %v234 = vsel %vm232, %v227, 0
      %236 = vmatprep.subr.mxu0 0.0
      %237 = vmatpush1.msra.mxu0 %v234
      %238 = vmatprep.subr.mxu0 0.0
      %239 = vmatpush1.msra.mxu0 0.0
      %240 = vmatprep.subr.mxu0 0.0
      %241 = vmatpush1.msra.mxu0 0.0
      %242 = vmatprep.subr.mxu0 0.0
      %243 = vmatpush1.msra.mxu0 0.0
      %244 = vmatprep.subr.mxu0 0.0
      %245 = vmatpush1.msra.mxu0 0.0
      %246 = vmatprep.subr.mxu0 0.0
      %247 = vmatpush1.msra.mxu0 0.0
      %248 = vmatprep.subr.mxu0 0.0
      %249 = vmatpush1.msra.mxu0 0.0
      %250 = vmatprep.subr.mxu0 0.0
      %251 = vmatpush1.msra.mxu0 0.0
      %252 = vmatprep.subr.mxu0 0.0
      %253 = vmatpush1.msra.mxu0 0.0
      %254 = vmatprep.subr.mxu0 0.0
      %255 = vmatpush1.msra.mxu0 0.0
      %256 = vmatprep.subr.mxu0 0.0
      %257 = vmatpush1.msra.mxu0 0.0
      %258 = vmatprep.subr.mxu0 0.0
      %259 = vmatpush1.msra.mxu0 0.0
      %260 = vmatprep.subr.mxu0 0.0
      %261 = vmatpush1.msra.mxu0 0.0
      %262 = vmatprep.subr.mxu0 0.0
      %263 = vmatpush1.msra.mxu0 0.0
      %264 = vmatprep.subr.mxu0 0.0
      %265 = vmatpush1.msra.mxu0 0.0
      %266 = vmatprep.subr.mxu0 0.0
      %267 = vmatpush1.msra.mxu0 0.0
      %268 = vmatprep.subr.mxu0 0.0
      %269 = vmatpush1.msra.mxu0 0.0
      %270 = vmatprep.subr.mxu0 0.0
      %271 = vmatpush1.msra.mxu0 0.0
      %272 = vmatprep.subr.mxu0 0.0
      %273 = vmatpush1.msra.mxu0 0.0
      %274 = vmatprep.subr.mxu0 0.0
      %275 = vmatpush1.msra.mxu0 0.0
      %276 = vmatprep.subr.mxu0 0.0
      %277 = vmatpush1.msra.mxu0 0.0
      %278 = vmatprep.subr.mxu0 0.0
      %279 = vmatpush1.msra.mxu0 0.0
      %280 = vmatprep.subr.mxu0 0.0
      %281 = vmatpush1.msra.mxu0 0.0
      %282 = vmatprep.subr.mxu0 0.0
      %283 = vmatpush1.msra.mxu0 0.0
      %284 = vmatprep.subr.mxu0 0.0
      %285 = vmatpush1.msra.mxu0 0.0
      %286 = vmatprep.subr.mxu0 0.0
      %287 = vmatpush1.msra.mxu0 0.0
      %288 = vmatprep.subr.mxu0 0.0
      %289 = vmatpush1.msra.mxu0 0.0
      %290 = vmatprep.subr.mxu0 0.0
      %291 = vmatpush1.msra.mxu0 0.0
      %292 = vmatprep.subr.mxu0 0.0
      %293 = vmatpush1.msra.mxu0 0.0
      %294 = vmatprep.subr.mxu0 0.0
      %295 = vmatpush1.msra.mxu0 0.0
      %296 = vmatprep.subr.mxu0 0.0
      %297 = vmatpush1.msra.mxu0 0.0
      %298 = vmatprep.subr.mxu0 0.0
      %299 = vmatpush1.msra.mxu0 0.0
      %300 = vmatprep.mubr.f32.mxu0 0.0
      %301 = vmatmul.mubr.f32.gmra.mrb[0].mxu0 %v230
      %v302 = vpop.f32.mrb[0].mxu0
      %v303 = vadd.f32 0.0, %v302
      %v304 = vpop.f32.mrb[0].mxu0
      %305 = vdwg.mxu0
      %v306 = vxor.u32 %v303, 2147483648
      %v307 = vmul.f32 %v306, 1.442695
      %v308 = vpow.pop %v307
      %v309 = vadd.f32 %v308, 1.0
      %v310 = vrcp.pop %v309
      %v311 = vmul.f32 1.0, %v310
      %vm312 = vcmask 123904
      %313 = vst.msk [vmem:[#allocation8] sm:$0x3] %vm312, %v311
    $region33: #{tpu_custom_call.1} parent=1 // pred_fallthru
      _
    // Predicated region
    $region34: #{tpu_custom_call.1} parent=1 // pred_check
      _
    $region35: #{tpu_custom_call.1} parent=1 // pred_check_branch
      %315 = sbr.rel (0) target = $region37
    $region36: #{tpu_custom_call.1} parent=1 // pred_region
      %s317 = ssub.s32 32, 32
      %318 = vsyncadd [#allocation5], %s317
      %s320 = sshll.u32 [#allocation8], 4
      %s321 = int_to_ptr.vmem [resolvable:$true] %s320
      %323 = dma.vmem_to_hbm [thread:$0]  %s321, 32, %s4, [#allocation5]
    $region37: #{tpu_custom_call.1} parent=1 // pred_fallthru
      _
    // Predicated region
    $region38: #{tpu_custom_call.1} parent=1 // pred_check
      _
    $region39: #{tpu_custom_call.1} parent=1 // pred_check_branch
      %325 = sbr.rel (0) target = $region41
    $region40: #{tpu_custom_call.1} parent=1 // pred_region
      %326 = dma.done [#allocation5], 32
    $region41: #{tpu_custom_call.1} parent=1 // pred_fallthru
      _
    %327 = vsyncpa [#allocation4], 1
    %328 = vsyncpa [#allocation7], 1
    %329 = vsyncpa [#allocation5], 1

</llo_original>
